<compile_context>
chip_gen: v5e
topology: v5e:2x2
jax: 0.10.0
libtpu: 0.0.40
codegen_flags: <defaults>
</compile_context>

<pallas_src>
import jax
import jax.numpy as jnp
import numpy as np
from jax import lax
from jax.experimental import pallas as pl
from jax.experimental.pallas import tpu as pltpu

_EPS = 1e-6
_LANES = 128        # samples per lane row
_MAX_TILE_R = 8     # sublane rows per grid step (8 x 128 = 1024 samples / step)


def _recip(x):
    """1/x via EUP approx reciprocal + one Newton step (f32-accurate)."""
    y = pl.reciprocal(x, approx=True)
    y = y * (2.0 - x * y)                       # Newton refinement
    # TODO(synk): x == -0.0 maps to +inf here while torch's 1/x gives -inf (measure-zero case).
    return jnp.where(x == 0.0, jnp.inf, y)      # preserve torch's 1/0 = inf


def _kent_kernel(wb_ref, x_ref, out_ref):
    """Batched Kent parameter estimation.

    wb_ref  : SMEM (12,)            weight row-major (wb[3k+j] = W[k, j]) then bias.
    x_ref   : VMEM (12, tr, 128)    rows 0-8: S row-major (x[3i+k] = S[i, k]);
                                    rows 9-11: xbar.  Sublanes/lanes = samples.
    out_ref : VMEM (2, tr, 128)     row 0: kappa, row 1: beta.
    """
    w = lambda k, j: wb_ref[3 * k + j]
    b = lambda j: wb_ref[9 + j]

    S_in = [[x_ref[3 * i + k] for k in range(3)] for i in range(3)]   # (tr, 128) each
    xb_in = [x_ref[9 + k] for k in range(3)]

    # Affine transform (torch.matmul(., W) + bias) as rank-1 VPU accumulation.
    S = [[S_in[i][0] * w(0, j) + S_in[i][1] * w(1, j) + S_in[i][2] * w(2, j) + b(j)
          for j in range(3)] for i in range(3)]
    xt = [xb_in[0] * w(0, j) + xb_in[1] * w(1, j) + xb_in[2] * w(2, j) + b(j)
          for j in range(3)]
    x0, x1, x2 = xt

    # gamma1 = x / ||x||; keep r1 = ||x|| for the kappa/beta denominators.
    nrm2 = x0 * x0 + x1 * x1 + x2 * x2
    inv_r1 = lax.rsqrt(nrm2)
    r1 = nrm2 * inv_r1                                       # = sqrt(nrm2), one EUP op fewer
    g0 = x0 * inv_r1
    g1 = x1 * inv_r1
    g2 = x2 * inv_r1

    # alpha = arccos(clip(g0)), eta = atan2(g2, g1 + eps*(g1==0)).
    # Only cos/sin are consumed downstream -> exact algebraic forms.
    ca = jnp.clip(g0, -1.0 + _EPS, 1.0 - _EPS)               # cos(alpha)
    sa = jnp.sqrt(jnp.maximum(1.0 - ca * ca, 0.0))           # sin(alpha) >= 0
    xe = g1 + jnp.where(g1 == 0.0, _EPS, 0.0)
    ye = g2
    inv_he = lax.rsqrt(xe * xe + ye * ye)
    ce = xe * inv_he                                         # cos(eta)
    se = ye * inv_he                                         # sin(eta)

    # H columns (column 0 is never consumed):
    #   h1 = (-sa, ca*ce, ca*se),  h2 = (0, -se, ce)
    cace = ca * ce
    case = ca * se

    v1 = [S[i][0] * (-sa) + S[i][1] * cace + S[i][2] * case for i in range(3)]  # S @ h1
    v2 = [S[i][1] * (-se) + S[i][2] * ce for i in range(3)]                     # S @ h2

    # Only the entries of B = Ht S H that are consumed downstream.
    B11 = -sa * v1[0] + cace * v1[1] + case * v1[2]
    B12 = -sa * v2[0] + cace * v2[1] + case * v2[2]
    B21 = -se * v1[1] + ce * v1[2]
    B22 = -se * v2[1] + ce * v2[2]

    # r2 = T11 - T22, T = Gt S G, G = H K(alpha_hat),
    # alpha_hat = 0.5*atan2(2*B12, B11-B22):
    #   r2 = cos(2a)*(B11-B22) + sin(2a)*(B12+B21)
    #   cos(2a) = c/r, sin(2a) = s/r,  s = 2*B12, c = B11-B22, r = sqrt(s^2+c^2)
    s_ah = 2.0 * B12
    c_ah = B11 - B22
    rsq = s_ah * s_ah + c_ah * c_ah
    inv_r = jnp.where(rsq == 0.0, 0.0, lax.rsqrt(rsq))       # r==0 -> r2==0 (atan2(0,0)=0)
    r2 = (c_ah * c_ah + s_ah * (B12 + B21)) * inv_r

    dm = 2.0 - 2.0 * r1 - r2
    dp = 2.0 - 2.0 * r1 + r2
    # TODO(synk): dm/dp ~ 0 yields inf exactly like the PyTorch reference (no extra clamp added).
    inv_dm = _recip(dm)
    inv_dp = _recip(dp)

    # Lane-dense unmasked stores: row 0 = kappa, row 1 = beta.
    out_ref[0] = jnp.maximum(1e-6, inv_dm + inv_dp)
    out_ref[1] = 0.5 * (inv_dm - inv_dp)


def _pack_params(weight, bias):
    """Pack (weight, bias) once into a (12,) f32 SMEM operand (hoisted out of the call path)."""
    weight = jnp.asarray(weight, jnp.float32).reshape(3, 3)
    bias = jnp.asarray(bias, jnp.float32).reshape(3)
    return jnp.concatenate([weight.reshape(9), bias], axis=0)


def _kent_batched(wb, S, xbar):
    """kappa, beta for a batch: wb (12,) packed params, S (B,3,3), xbar (B,3)."""
    B = S.shape[0]
    R = (B + _LANES - 1) // _LANES                           # lane rows needed
    tile_r = _MAX_TILE_R if R >= _MAX_TILE_R else max(R, 1)
    R_pad = ((R + tile_r - 1) // tile_r) * tile_r
    B_pad = R_pad * _LANES

    # Lane-major packing: (B, 12) -> (12, R_pad, 128).  Padded lanes hold zeros;
    # their (garbage) results are sliced off below.
    flat = jnp.concatenate([S.reshape(B, 9), xbar.reshape(B, 3)], axis=-1)
    flat = jnp.pad(flat, ((0, B_pad - B), (0, 0)))
    packed = flat.T.reshape(12, R_pad, _LANES)

    out = pl.pallas_call(
        _kent_kernel,
        out_shape=jax.ShapeDtypeStruct((2, R_pad, _LANES), jnp.float32),
        grid=(R_pad // tile_r,),
        in_specs=[
            pl.BlockSpec(memory_space=pltpu.MemorySpace.SMEM),          # packed params
            pl.BlockSpec((12, tile_r, _LANES), lambda i: (0, i, 0)),    # S/xbar batch tile
        ],
        out_specs=pl.BlockSpec((2, tile_r, _LANES), lambda i: (0, i, 0)),
        compiler_params=pltpu.CompilerParams(
            dimension_semantics=("parallel",)),                         # shard over v7x's 2 TCs
    )(wb, packed)

    out = out.reshape(2, B_pad)[:, :B]
    return out[0], out[1]


_kent_batched_jit = jax.jit(_kent_batched)


class SimpleModelPallas:
    """Pallas equivalent of SimpleModel: forward(S, xbar) -> (kappa, beta)."""

    def __init__(self, weight, bias):
        self.weight = jnp.asarray(weight, jnp.float32).reshape(3, 3)
        self.bias = jnp.asarray(bias, jnp.float32).reshape(3)
        self._wb = _pack_params(self.weight, self.bias)      # packed once, reused every call

    def __call__(self, S, xbar):
        S = jnp.asarray(S, jnp.float32)
        xbar = jnp.asarray(xbar, jnp.float32)
        single = S.ndim == 2
        batch_shape = () if single else S.shape[:-2]
        kappa, beta = _kent_batched_jit(self._wb, S.reshape(-1, 3, 3), xbar.reshape(-1, 3))
        if single:
            return kappa[0], beta[0]
        return kappa.reshape(batch_shape), beta.reshape(batch_shape)


def _kent_reference(S, xbar, weight, bias):
    """Pure-JAX faithful translation of SimpleModel.forward (single sample)."""
    eps = 1e-6
    St = S @ weight + bias
    xt = xbar @ weight + bias
    r1 = jnp.sqrt(jnp.sum(xt * xt))
    g = xt / r1
    alpha = jnp.arccos(jnp.clip(g[0], -1.0 + eps, 1.0 - eps))
    eta = jnp.arctan2(g[2], g[1] + jnp.where(g[1] == 0.0, eps, 0.0))
    ca, sa = jnp.cos(alpha), jnp.sin(alpha)
    ce, se = jnp.cos(eta), jnp.sin(eta)
    z = jnp.zeros(())
    one = jnp.ones(())
    H = jnp.stack([jnp.stack([ca, -sa, z]),
                   jnp.stack([sa * ce, ca * ce, -se]),
                   jnp.stack([sa * se, ca * se, ce])])
    Bm = H.T @ St @ H
    ah = 0.5 * jnp.arctan2(2.0 * Bm[1, 2], Bm[1, 1] - Bm[2, 2])
    cah, sah = jnp.cos(ah), jnp.sin(ah)
    K = jnp.stack([jnp.stack([one, z, z]),
                   jnp.stack([z, cah, -sah]),
                   jnp.stack([z, sah, cah])])
    G = H @ K
    T = G.T @ St @ G
    r2 = T[1, 1] - T[2, 2]
    dm = 2.0 - 2.0 * r1 - r2
    dp = 2.0 - 2.0 * r1 + r2
    kappa = jnp.maximum(1e-6, 1.0 / dm + 1.0 / dp)
    beta = 0.5 * (1.0 / dm - 1.0 / dp)
    return kappa, beta


if __name__ == "__main__":
    key = jax.random.PRNGKey(0)
    k_w, k_b, k_s, k_x = jax.random.split(key, 4)

    # Deterministic "parameters" (stand-ins for nn.Parameter(torch.randn(...)))
    weight = jax.random.normal(k_w, (3, 3), jnp.float32)
    bias = jax.random.normal(k_b, (3,), jnp.float32)
    model = SimpleModelPallas(weight, bias)

    # Forward inputs: small batch of dispersion matrices S and mean directions xbar.
    batch = 8
    S = jax.random.normal(k_s, (batch, 3, 3), jnp.float32)
    xbar = jax.random.normal(k_x, (batch, 3), jnp.float32)

    kappa, beta = model(S, xbar)
    jax.block_until_ready((kappa, beta))

    # Single-sample path == original SimpleModel.forward semantics.
    k0, b0 = model(S[0], xbar[0])
    jax.block_until_ready((k0, b0))

    # Pure-JAX reference check (faithful torch translation, per-sample).
    kref = np.array([np.asarray(_kent_reference(S[i], xbar[i], weight, bias)[0]) for i in range(batch)])
    bref = np.array([np.asarray(_kent_reference(S[i], xbar[i], weight, bias)[1]) for i in range(batch)])
    np.testing.assert_allclose(np.asarray(kappa), kref, rtol=1e-2, atol=1e-4)
    np.testing.assert_allclose(np.asarray(beta), bref, rtol=1e-2, atol=1e-4)
    np.testing.assert_allclose(np.asarray(k0), kref[0], rtol=1e-2, atol=1e-4)
    np.testing.assert_allclose(np.asarray(b0), bref[0], rtol=1e-2, atol=1e-4)

    print("KERNEL_OK")
</pallas_src>

<mosaic_0001>
module attributes {stable_mosaic.version = 11 : i64} {
  func.func @_kent_kernel(%arg0: i32, %arg1: memref<12xf32, #tpu.memory_space<smem>>, %arg2: memref<12x1x128xf32, #tpu.memory_space<vmem>>, %arg3: memref<2x1x128xf32, #tpu.memory_space<vmem>>) attributes {dimension_semantics = [#tpu.dimension_semantics<parallel>], iteration_bounds = array<i64: 1>, scalar_prefetch = 0 : i64, scratch_operands = 0 : i64, tpu.core_type = #tpu.core_type<tc>, window_params = [{transform_indices = @transform_0, window_bounds = array<i64: 12>}, {transform_indices = @transform_1, window_bounds = array<i64: 12, 1, 128>}, {transform_indices = @transform_2, window_bounds = array<i64: 2, 1, 128>}]} {
    %c0 = arith.constant 0 : index
    %c0_0 = arith.constant 0 : index
    %c0_1 = arith.constant 0 : index
    %0 = vector.load %arg2[%c0, %c0_0, %c0_1] : memref<12x1x128xf32, #tpu.memory_space<vmem>>, vector<1x1x128xf32>
    %1 = vector.shape_cast %0 : vector<1x1x128xf32> to vector<1x128xf32>
    %c1 = arith.constant 1 : index
    %c0_2 = arith.constant 0 : index
    %c0_3 = arith.constant 0 : index
    %2 = vector.load %arg2[%c1, %c0_2, %c0_3] : memref<12x1x128xf32, #tpu.memory_space<vmem>>, vector<1x1x128xf32>
    %3 = vector.shape_cast %2 : vector<1x1x128xf32> to vector<1x128xf32>
    %c2 = arith.constant 2 : index
    %c0_4 = arith.constant 0 : index
    %c0_5 = arith.constant 0 : index
    %4 = vector.load %arg2[%c2, %c0_4, %c0_5] : memref<12x1x128xf32, #tpu.memory_space<vmem>>, vector<1x1x128xf32>
    %5 = vector.shape_cast %4 : vector<1x1x128xf32> to vector<1x128xf32>
    %c3 = arith.constant 3 : index
    %c0_6 = arith.constant 0 : index
    %c0_7 = arith.constant 0 : index
    %6 = vector.load %arg2[%c3, %c0_6, %c0_7] : memref<12x1x128xf32, #tpu.memory_space<vmem>>, vector<1x1x128xf32>
    %7 = vector.shape_cast %6 : vector<1x1x128xf32> to vector<1x128xf32>
    %c4 = arith.constant 4 : index
    %c0_8 = arith.constant 0 : index
    %c0_9 = arith.constant 0 : index
    %8 = vector.load %arg2[%c4, %c0_8, %c0_9] : memref<12x1x128xf32, #tpu.memory_space<vmem>>, vector<1x1x128xf32>
    %9 = vector.shape_cast %8 : vector<1x1x128xf32> to vector<1x128xf32>
    %c5 = arith.constant 5 : index
    %c0_10 = arith.constant 0 : index
    %c0_11 = arith.constant 0 : index
    %10 = vector.load %arg2[%c5, %c0_10, %c0_11] : memref<12x1x128xf32, #tpu.memory_space<vmem>>, vector<1x1x128xf32>
    %11 = vector.shape_cast %10 : vector<1x1x128xf32> to vector<1x128xf32>
    %c6 = arith.constant 6 : index
    %c0_12 = arith.constant 0 : index
    %c0_13 = arith.constant 0 : index
    %12 = vector.load %arg2[%c6, %c0_12, %c0_13] : memref<12x1x128xf32, #tpu.memory_space<vmem>>, vector<1x1x128xf32>
    %13 = vector.shape_cast %12 : vector<1x1x128xf32> to vector<1x128xf32>
    %c7 = arith.constant 7 : index
    %c0_14 = arith.constant 0 : index
    %c0_15 = arith.constant 0 : index
    %14 = vector.load %arg2[%c7, %c0_14, %c0_15] : memref<12x1x128xf32, #tpu.memory_space<vmem>>, vector<1x1x128xf32>
    %15 = vector.shape_cast %14 : vector<1x1x128xf32> to vector<1x128xf32>
    %c8 = arith.constant 8 : index
    %c0_16 = arith.constant 0 : index
    %c0_17 = arith.constant 0 : index
    %16 = vector.load %arg2[%c8, %c0_16, %c0_17] : memref<12x1x128xf32, #tpu.memory_space<vmem>>, vector<1x1x128xf32>
    %17 = vector.shape_cast %16 : vector<1x1x128xf32> to vector<1x128xf32>
    %c9 = arith.constant 9 : index
    %c0_18 = arith.constant 0 : index
    %c0_19 = arith.constant 0 : index
    %18 = vector.load %arg2[%c9, %c0_18, %c0_19] : memref<12x1x128xf32, #tpu.memory_space<vmem>>, vector<1x1x128xf32>
    %19 = vector.shape_cast %18 : vector<1x1x128xf32> to vector<1x128xf32>
    %c10 = arith.constant 10 : index
    %c0_20 = arith.constant 0 : index
    %c0_21 = arith.constant 0 : index
    %20 = vector.load %arg2[%c10, %c0_20, %c0_21] : memref<12x1x128xf32, #tpu.memory_space<vmem>>, vector<1x1x128xf32>
    %21 = vector.shape_cast %20 : vector<1x1x128xf32> to vector<1x128xf32>
    %c11 = arith.constant 11 : index
    %c0_22 = arith.constant 0 : index
    %c0_23 = arith.constant 0 : index
    %22 = vector.load %arg2[%c11, %c0_22, %c0_23] : memref<12x1x128xf32, #tpu.memory_space<vmem>>, vector<1x1x128xf32>
    %23 = vector.shape_cast %22 : vector<1x1x128xf32> to vector<1x128xf32>
    %c0_24 = arith.constant 0 : index
    %24 = memref.load %arg1[%c0_24] : memref<12xf32, #tpu.memory_space<smem>>
    %25 = vector.broadcast %24 : f32 to vector<1x128xf32>
    %26 = arith.mulf %1, %25 : vector<1x128xf32>
    %c3_25 = arith.constant 3 : index
    %27 = memref.load %arg1[%c3_25] : memref<12xf32, #tpu.memory_space<smem>>
    %28 = vector.broadcast %27 : f32 to vector<1x128xf32>
    %29 = arith.mulf %3, %28 : vector<1x128xf32>
    %30 = arith.addf %26, %29 : vector<1x128xf32>
    %c6_26 = arith.constant 6 : index
    %31 = memref.load %arg1[%c6_26] : memref<12xf32, #tpu.memory_space<smem>>
    %32 = vector.broadcast %31 : f32 to vector<1x128xf32>
    %33 = arith.mulf %5, %32 : vector<1x128xf32>
    %34 = arith.addf %30, %33 : vector<1x128xf32>
    %c9_27 = arith.constant 9 : index
    %35 = memref.load %arg1[%c9_27] : memref<12xf32, #tpu.memory_space<smem>>
    %36 = vector.broadcast %35 : f32 to vector<1x128xf32>
    %37 = arith.addf %34, %36 : vector<1x128xf32>
    %c1_28 = arith.constant 1 : index
    %38 = memref.load %arg1[%c1_28] : memref<12xf32, #tpu.memory_space<smem>>
    %39 = vector.broadcast %38 : f32 to vector<1x128xf32>
    %40 = arith.mulf %1, %39 : vector<1x128xf32>
    %c4_29 = arith.constant 4 : index
    %41 = memref.load %arg1[%c4_29] : memref<12xf32, #tpu.memory_space<smem>>
    %42 = vector.broadcast %41 : f32 to vector<1x128xf32>
    %43 = arith.mulf %3, %42 : vector<1x128xf32>
    %44 = arith.addf %40, %43 : vector<1x128xf32>
    %c7_30 = arith.constant 7 : index
    %45 = memref.load %arg1[%c7_30] : memref<12xf32, #tpu.memory_space<smem>>
    %46 = vector.broadcast %45 : f32 to vector<1x128xf32>
    %47 = arith.mulf %5, %46 : vector<1x128xf32>
    %48 = arith.addf %44, %47 : vector<1x128xf32>
    %c10_31 = arith.constant 10 : index
    %49 = memref.load %arg1[%c10_31] : memref<12xf32, #tpu.memory_space<smem>>
    %50 = vector.broadcast %49 : f32 to vector<1x128xf32>
    %51 = arith.addf %48, %50 : vector<1x128xf32>
    %c2_32 = arith.constant 2 : index
    %52 = memref.load %arg1[%c2_32] : memref<12xf32, #tpu.memory_space<smem>>
    %53 = vector.broadcast %52 : f32 to vector<1x128xf32>
    %54 = arith.mulf %1, %53 : vector<1x128xf32>
    %c5_33 = arith.constant 5 : index
    %55 = memref.load %arg1[%c5_33] : memref<12xf32, #tpu.memory_space<smem>>
    %56 = vector.broadcast %55 : f32 to vector<1x128xf32>
    %57 = arith.mulf %3, %56 : vector<1x128xf32>
    %58 = arith.addf %54, %57 : vector<1x128xf32>
    %c8_34 = arith.constant 8 : index
    %59 = memref.load %arg1[%c8_34] : memref<12xf32, #tpu.memory_space<smem>>
    %60 = vector.broadcast %59 : f32 to vector<1x128xf32>
    %61 = arith.mulf %5, %60 : vector<1x128xf32>
    %62 = arith.addf %58, %61 : vector<1x128xf32>
    %c11_35 = arith.constant 11 : index
    %63 = memref.load %arg1[%c11_35] : memref<12xf32, #tpu.memory_space<smem>>
    %64 = vector.broadcast %63 : f32 to vector<1x128xf32>
    %65 = arith.addf %62, %64 : vector<1x128xf32>
    %c0_36 = arith.constant 0 : index
    %66 = memref.load %arg1[%c0_36] : memref<12xf32, #tpu.memory_space<smem>>
    %67 = vector.broadcast %66 : f32 to vector<1x128xf32>
    %68 = arith.mulf %7, %67 : vector<1x128xf32>
    %c3_37 = arith.constant 3 : index
    %69 = memref.load %arg1[%c3_37] : memref<12xf32, #tpu.memory_space<smem>>
    %70 = vector.broadcast %69 : f32 to vector<1x128xf32>
    %71 = arith.mulf %9, %70 : vector<1x128xf32>
    %72 = arith.addf %68, %71 : vector<1x128xf32>
    %c6_38 = arith.constant 6 : index
    %73 = memref.load %arg1[%c6_38] : memref<12xf32, #tpu.memory_space<smem>>
    %74 = vector.broadcast %73 : f32 to vector<1x128xf32>
    %75 = arith.mulf %11, %74 : vector<1x128xf32>
    %76 = arith.addf %72, %75 : vector<1x128xf32>
    %c9_39 = arith.constant 9 : index
    %77 = memref.load %arg1[%c9_39] : memref<12xf32, #tpu.memory_space<smem>>
    %78 = vector.broadcast %77 : f32 to vector<1x128xf32>
    %79 = arith.addf %76, %78 : vector<1x128xf32>
    %c1_40 = arith.constant 1 : index
    %80 = memref.load %arg1[%c1_40] : memref<12xf32, #tpu.memory_space<smem>>
    %81 = vector.broadcast %80 : f32 to vector<1x128xf32>
    %82 = arith.mulf %7, %81 : vector<1x128xf32>
    %c4_41 = arith.constant 4 : index
    %83 = memref.load %arg1[%c4_41] : memref<12xf32, #tpu.memory_space<smem>>
    %84 = vector.broadcast %83 : f32 to vector<1x128xf32>
    %85 = arith.mulf %9, %84 : vector<1x128xf32>
    %86 = arith.addf %82, %85 : vector<1x128xf32>
    %c7_42 = arith.constant 7 : index
    %87 = memref.load %arg1[%c7_42] : memref<12xf32, #tpu.memory_space<smem>>
    %88 = vector.broadcast %87 : f32 to vector<1x128xf32>
    %89 = arith.mulf %11, %88 : vector<1x128xf32>
    %90 = arith.addf %86, %89 : vector<1x128xf32>
    %c10_43 = arith.constant 10 : index
    %91 = memref.load %arg1[%c10_43] : memref<12xf32, #tpu.memory_space<smem>>
    %92 = vector.broadcast %91 : f32 to vector<1x128xf32>
    %93 = arith.addf %90, %92 : vector<1x128xf32>
    %c2_44 = arith.constant 2 : index
    %94 = memref.load %arg1[%c2_44] : memref<12xf32, #tpu.memory_space<smem>>
    %95 = vector.broadcast %94 : f32 to vector<1x128xf32>
    %96 = arith.mulf %7, %95 : vector<1x128xf32>
    %c5_45 = arith.constant 5 : index
    %97 = memref.load %arg1[%c5_45] : memref<12xf32, #tpu.memory_space<smem>>
    %98 = vector.broadcast %97 : f32 to vector<1x128xf32>
    %99 = arith.mulf %9, %98 : vector<1x128xf32>
    %100 = arith.addf %96, %99 : vector<1x128xf32>
    %c8_46 = arith.constant 8 : index
    %101 = memref.load %arg1[%c8_46] : memref<12xf32, #tpu.memory_space<smem>>
    %102 = vector.broadcast %101 : f32 to vector<1x128xf32>
    %103 = arith.mulf %11, %102 : vector<1x128xf32>
    %104 = arith.addf %100, %103 : vector<1x128xf32>
    %c11_47 = arith.constant 11 : index
    %105 = memref.load %arg1[%c11_47] : memref<12xf32, #tpu.memory_space<smem>>
    %106 = vector.broadcast %105 : f32 to vector<1x128xf32>
    %107 = arith.addf %104, %106 : vector<1x128xf32>
    %c0_48 = arith.constant 0 : index
    %108 = memref.load %arg1[%c0_48] : memref<12xf32, #tpu.memory_space<smem>>
    %109 = vector.broadcast %108 : f32 to vector<1x128xf32>
    %110 = arith.mulf %13, %109 : vector<1x128xf32>
    %c3_49 = arith.constant 3 : index
    %111 = memref.load %arg1[%c3_49] : memref<12xf32, #tpu.memory_space<smem>>
    %112 = vector.broadcast %111 : f32 to vector<1x128xf32>
    %113 = arith.mulf %15, %112 : vector<1x128xf32>
    %114 = arith.addf %110, %113 : vector<1x128xf32>
    %c6_50 = arith.constant 6 : index
    %115 = memref.load %arg1[%c6_50] : memref<12xf32, #tpu.memory_space<smem>>
    %116 = vector.broadcast %115 : f32 to vector<1x128xf32>
    %117 = arith.mulf %17, %116 : vector<1x128xf32>
    %118 = arith.addf %114, %117 : vector<1x128xf32>
    %c9_51 = arith.constant 9 : index
    %119 = memref.load %arg1[%c9_51] : memref<12xf32, #tpu.memory_space<smem>>
    %120 = vector.broadcast %119 : f32 to vector<1x128xf32>
    %121 = arith.addf %118, %120 : vector<1x128xf32>
    %c1_52 = arith.constant 1 : index
    %122 = memref.load %arg1[%c1_52] : memref<12xf32, #tpu.memory_space<smem>>
    %123 = vector.broadcast %122 : f32 to vector<1x128xf32>
    %124 = arith.mulf %13, %123 : vector<1x128xf32>
    %c4_53 = arith.constant 4 : index
    %125 = memref.load %arg1[%c4_53] : memref<12xf32, #tpu.memory_space<smem>>
    %126 = vector.broadcast %125 : f32 to vector<1x128xf32>
    %127 = arith.mulf %15, %126 : vector<1x128xf32>
    %128 = arith.addf %124, %127 : vector<1x128xf32>
    %c7_54 = arith.constant 7 : index
    %129 = memref.load %arg1[%c7_54] : memref<12xf32, #tpu.memory_space<smem>>
    %130 = vector.broadcast %129 : f32 to vector<1x128xf32>
    %131 = arith.mulf %17, %130 : vector<1x128xf32>
    %132 = arith.addf %128, %131 : vector<1x128xf32>
    %c10_55 = arith.constant 10 : index
    %133 = memref.load %arg1[%c10_55] : memref<12xf32, #tpu.memory_space<smem>>
    %134 = vector.broadcast %133 : f32 to vector<1x128xf32>
    %135 = arith.addf %132, %134 : vector<1x128xf32>
    %c2_56 = arith.constant 2 : index
    %136 = memref.load %arg1[%c2_56] : memref<12xf32, #tpu.memory_space<smem>>
    %137 = vector.broadcast %136 : f32 to vector<1x128xf32>
    %138 = arith.mulf %13, %137 : vector<1x128xf32>
    %c5_57 = arith.constant 5 : index
    %139 = memref.load %arg1[%c5_57] : memref<12xf32, #tpu.memory_space<smem>>
    %140 = vector.broadcast %139 : f32 to vector<1x128xf32>
    %141 = arith.mulf %15, %140 : vector<1x128xf32>
    %142 = arith.addf %138, %141 : vector<1x128xf32>
    %c8_58 = arith.constant 8 : index
    %143 = memref.load %arg1[%c8_58] : memref<12xf32, #tpu.memory_space<smem>>
    %144 = vector.broadcast %143 : f32 to vector<1x128xf32>
    %145 = arith.mulf %17, %144 : vector<1x128xf32>
    %146 = arith.addf %142, %145 : vector<1x128xf32>
    %c11_59 = arith.constant 11 : index
    %147 = memref.load %arg1[%c11_59] : memref<12xf32, #tpu.memory_space<smem>>
    %148 = vector.broadcast %147 : f32 to vector<1x128xf32>
    %149 = arith.addf %146, %148 : vector<1x128xf32>
    %c0_60 = arith.constant 0 : index
    %150 = memref.load %arg1[%c0_60] : memref<12xf32, #tpu.memory_space<smem>>
    %151 = vector.broadcast %150 : f32 to vector<1x128xf32>
    %152 = arith.mulf %19, %151 : vector<1x128xf32>
    %c3_61 = arith.constant 3 : index
    %153 = memref.load %arg1[%c3_61] : memref<12xf32, #tpu.memory_space<smem>>
    %154 = vector.broadcast %153 : f32 to vector<1x128xf32>
    %155 = arith.mulf %21, %154 : vector<1x128xf32>
    %156 = arith.addf %152, %155 : vector<1x128xf32>
    %c6_62 = arith.constant 6 : index
    %157 = memref.load %arg1[%c6_62] : memref<12xf32, #tpu.memory_space<smem>>
    %158 = vector.broadcast %157 : f32 to vector<1x128xf32>
    %159 = arith.mulf %23, %158 : vector<1x128xf32>
    %160 = arith.addf %156, %159 : vector<1x128xf32>
    %c9_63 = arith.constant 9 : index
    %161 = memref.load %arg1[%c9_63] : memref<12xf32, #tpu.memory_space<smem>>
    %162 = vector.broadcast %161 : f32 to vector<1x128xf32>
    %163 = arith.addf %160, %162 : vector<1x128xf32>
    %c1_64 = arith.constant 1 : index
    %164 = memref.load %arg1[%c1_64] : memref<12xf32, #tpu.memory_space<smem>>
    %165 = vector.broadcast %164 : f32 to vector<1x128xf32>
    %166 = arith.mulf %19, %165 : vector<1x128xf32>
    %c4_65 = arith.constant 4 : index
    %167 = memref.load %arg1[%c4_65] : memref<12xf32, #tpu.memory_space<smem>>
    %168 = vector.broadcast %167 : f32 to vector<1x128xf32>
    %169 = arith.mulf %21, %168 : vector<1x128xf32>
    %170 = arith.addf %166, %169 : vector<1x128xf32>
    %c7_66 = arith.constant 7 : index
    %171 = memref.load %arg1[%c7_66] : memref<12xf32, #tpu.memory_space<smem>>
    %172 = vector.broadcast %171 : f32 to vector<1x128xf32>
    %173 = arith.mulf %23, %172 : vector<1x128xf32>
    %174 = arith.addf %170, %173 : vector<1x128xf32>
    %c10_67 = arith.constant 10 : index
    %175 = memref.load %arg1[%c10_67] : memref<12xf32, #tpu.memory_space<smem>>
    %176 = vector.broadcast %175 : f32 to vector<1x128xf32>
    %177 = arith.addf %174, %176 : vector<1x128xf32>
    %c2_68 = arith.constant 2 : index
    %178 = memref.load %arg1[%c2_68] : memref<12xf32, #tpu.memory_space<smem>>
    %179 = vector.broadcast %178 : f32 to vector<1x128xf32>
    %180 = arith.mulf %19, %179 : vector<1x128xf32>
    %c5_69 = arith.constant 5 : index
    %181 = memref.load %arg1[%c5_69] : memref<12xf32, #tpu.memory_space<smem>>
    %182 = vector.broadcast %181 : f32 to vector<1x128xf32>
    %183 = arith.mulf %21, %182 : vector<1x128xf32>
    %184 = arith.addf %180, %183 : vector<1x128xf32>
    %c8_70 = arith.constant 8 : index
    %185 = memref.load %arg1[%c8_70] : memref<12xf32, #tpu.memory_space<smem>>
    %186 = vector.broadcast %185 : f32 to vector<1x128xf32>
    %187 = arith.mulf %23, %186 : vector<1x128xf32>
    %188 = arith.addf %184, %187 : vector<1x128xf32>
    %c11_71 = arith.constant 11 : index
    %189 = memref.load %arg1[%c11_71] : memref<12xf32, #tpu.memory_space<smem>>
    %190 = vector.broadcast %189 : f32 to vector<1x128xf32>
    %191 = arith.addf %188, %190 : vector<1x128xf32>
    %192 = arith.mulf %163, %163 : vector<1x128xf32>
    %193 = arith.mulf %177, %177 : vector<1x128xf32>
    %194 = arith.addf %192, %193 : vector<1x128xf32>
    %195 = arith.mulf %191, %191 : vector<1x128xf32>
    %196 = arith.addf %194, %195 : vector<1x128xf32>
    %197 = math.rsqrt %196 : vector<1x128xf32>
    %198 = arith.mulf %196, %197 : vector<1x128xf32>
    %199 = arith.mulf %163, %197 : vector<1x128xf32>
    %200 = arith.mulf %177, %197 : vector<1x128xf32>
    %201 = arith.mulf %191, %197 : vector<1x128xf32>
    %cst = arith.constant -0.999998986 : f32
    %cst_72 = arith.constant 0.999998986 : f32
    %202 = vector.broadcast %cst : f32 to vector<1x128xf32>
    %203 = arith.maximumf %202, %199 : vector<1x128xf32>
    %204 = vector.broadcast %cst_72 : f32 to vector<1x128xf32>
    %205 = arith.minimumf %204, %203 : vector<1x128xf32>
    %206 = arith.mulf %205, %205 : vector<1x128xf32>
    %cst_73 = arith.constant 1.000000e+00 : f32
    %207 = vector.broadcast %cst_73 : f32 to vector<1x128xf32>
    %208 = arith.subf %207, %206 : vector<1x128xf32>
    %cst_74 = arith.constant 0.000000e+00 : f32
    %209 = vector.broadcast %cst_74 : f32 to vector<1x128xf32>
    %210 = arith.maximumf %208, %209 : vector<1x128xf32>
    %211 = math.sqrt %210 : vector<1x128xf32>
    %cst_75 = arith.constant 0.000000e+00 : f32
    %212 = vector.broadcast %cst_75 : f32 to vector<1x128xf32>
    %213 = arith.cmpf oeq, %200, %212 : vector<1x128xf32>
    %cst_76 = arith.constant 9.99999997E-7 : f32
    %cst_77 = arith.constant 0.000000e+00 : f32
    %214 = vector.broadcast %cst_76 : f32 to vector<1x128xf32>
    %215 = vector.broadcast %cst_77 : f32 to vector<1x128xf32>
    %216 = arith.select %213, %214, %215 : vector<1x128xi1>, vector<1x128xf32>
    %217 = arith.addf %200, %216 : vector<1x128xf32>
    %218 = arith.mulf %217, %217 : vector<1x128xf32>
    %219 = arith.mulf %201, %201 : vector<1x128xf32>
    %220 = arith.addf %218, %219 : vector<1x128xf32>
    %221 = math.rsqrt %220 : vector<1x128xf32>
    %222 = arith.mulf %217, %221 : vector<1x128xf32>
    %223 = arith.mulf %201, %221 : vector<1x128xf32>
    %224 = arith.mulf %205, %222 : vector<1x128xf32>
    %225 = arith.mulf %205, %223 : vector<1x128xf32>
    %cst_78 = arith.constant 0.000000e+00 : f32
    %226 = vector.broadcast %cst_78 : f32 to vector<1x128xf32>
    %227 = arith.subf %226, %211 : vector<1x128xf32>
    %228 = arith.mulf %37, %227 : vector<1x128xf32>
    %229 = arith.mulf %51, %224 : vector<1x128xf32>
    %230 = arith.addf %228, %229 : vector<1x128xf32>
    %231 = arith.mulf %65, %225 : vector<1x128xf32>
    %232 = arith.addf %230, %231 : vector<1x128xf32>
    %cst_79 = arith.constant 0.000000e+00 : f32
    %233 = vector.broadcast %cst_79 : f32 to vector<1x128xf32>
    %234 = arith.subf %233, %211 : vector<1x128xf32>
    %235 = arith.mulf %79, %234 : vector<1x128xf32>
    %236 = arith.mulf %93, %224 : vector<1x128xf32>
    %237 = arith.addf %235, %236 : vector<1x128xf32>
    %238 = arith.mulf %107, %225 : vector<1x128xf32>
    %239 = arith.addf %237, %238 : vector<1x128xf32>
    %cst_80 = arith.constant 0.000000e+00 : f32
    %240 = vector.broadcast %cst_80 : f32 to vector<1x128xf32>
    %241 = arith.subf %240, %211 : vector<1x128xf32>
    %242 = arith.mulf %121, %241 : vector<1x128xf32>
    %243 = arith.mulf %135, %224 : vector<1x128xf32>
    %244 = arith.addf %242, %243 : vector<1x128xf32>
    %245 = arith.mulf %149, %225 : vector<1x128xf32>
    %246 = arith.addf %244, %245 : vector<1x128xf32>
    %cst_81 = arith.constant 0.000000e+00 : f32
    %247 = vector.broadcast %cst_81 : f32 to vector<1x128xf32>
    %248 = arith.subf %247, %223 : vector<1x128xf32>
    %249 = arith.mulf %51, %248 : vector<1x128xf32>
    %250 = arith.mulf %65, %222 : vector<1x128xf32>
    %251 = arith.addf %249, %250 : vector<1x128xf32>
    %cst_82 = arith.constant 0.000000e+00 : f32
    %252 = vector.broadcast %cst_82 : f32 to vector<1x128xf32>
    %253 = arith.subf %252, %223 : vector<1x128xf32>
    %254 = arith.mulf %93, %253 : vector<1x128xf32>
    %255 = arith.mulf %107, %222 : vector<1x128xf32>
    %256 = arith.addf %254, %255 : vector<1x128xf32>
    %cst_83 = arith.constant 0.000000e+00 : f32
    %257 = vector.broadcast %cst_83 : f32 to vector<1x128xf32>
    %258 = arith.subf %257, %223 : vector<1x128xf32>
    %259 = arith.mulf %135, %258 : vector<1x128xf32>
    %260 = arith.mulf %149, %222 : vector<1x128xf32>
    %261 = arith.addf %259, %260 : vector<1x128xf32>
    %cst_84 = arith.constant 0.000000e+00 : f32
    %262 = vector.broadcast %cst_84 : f32 to vector<1x128xf32>
    %263 = arith.subf %262, %211 : vector<1x128xf32>
    %264 = arith.mulf %263, %232 : vector<1x128xf32>
    %265 = arith.mulf %224, %239 : vector<1x128xf32>
    %266 = arith.addf %264, %265 : vector<1x128xf32>
    %267 = arith.mulf %225, %246 : vector<1x128xf32>
    %268 = arith.addf %266, %267 : vector<1x128xf32>
    %cst_85 = arith.constant 0.000000e+00 : f32
    %269 = vector.broadcast %cst_85 : f32 to vector<1x128xf32>
    %270 = arith.subf %269, %211 : vector<1x128xf32>
    %271 = arith.mulf %270, %251 : vector<1x128xf32>
    %272 = arith.mulf %224, %256 : vector<1x128xf32>
    %273 = arith.addf %271, %272 : vector<1x128xf32>
    %274 = arith.mulf %225, %261 : vector<1x128xf32>
    %275 = arith.addf %273, %274 : vector<1x128xf32>
    %cst_86 = arith.constant 0.000000e+00 : f32
    %276 = vector.broadcast %cst_86 : f32 to vector<1x128xf32>
    %277 = arith.subf %276, %223 : vector<1x128xf32>
    %278 = arith.mulf %277, %239 : vector<1x128xf32>
    %279 = arith.mulf %222, %246 : vector<1x128xf32>
    %280 = arith.addf %278, %279 : vector<1x128xf32>
    %cst_87 = arith.constant 0.000000e+00 : f32
    %281 = vector.broadcast %cst_87 : f32 to vector<1x128xf32>
    %282 = arith.subf %281, %223 : vector<1x128xf32>
    %283 = arith.mulf %282, %256 : vector<1x128xf32>
    %284 = arith.mulf %222, %261 : vector<1x128xf32>
    %285 = arith.addf %283, %284 : vector<1x128xf32>
    %cst_88 = arith.constant 2.000000e+00 : f32
    %286 = vector.broadcast %cst_88 : f32 to vector<1x128xf32>
    %287 = arith.mulf %286, %275 : vector<1x128xf32>
    %288 = arith.subf %268, %285 : vector<1x128xf32>
    %289 = arith.mulf %287, %287 : vector<1x128xf32>
    %290 = arith.mulf %288, %288 : vector<1x128xf32>
    %291 = arith.addf %289, %290 : vector<1x128xf32>
    %cst_89 = arith.constant 0.000000e+00 : f32
    %292 = vector.broadcast %cst_89 : f32 to vector<1x128xf32>
    %293 = arith.cmpf oeq, %291, %292 : vector<1x128xf32>
    %294 = math.rsqrt %291 : vector<1x128xf32>
    %cst_90 = arith.constant 0.000000e+00 : f32
    %295 = vector.broadcast %cst_90 : f32 to vector<1x128xf32>
    %296 = arith.select %293, %295, %294 : vector<1x128xi1>, vector<1x128xf32>
    %297 = arith.mulf %288, %288 : vector<1x128xf32>
    %298 = arith.addf %275, %280 : vector<1x128xf32>
    %299 = arith.mulf %287, %298 : vector<1x128xf32>
    %300 = arith.addf %297, %299 : vector<1x128xf32>
    %301 = arith.mulf %300, %296 : vector<1x128xf32>
    %cst_91 = arith.constant 2.000000e+00 : f32
    %302 = vector.broadcast %cst_91 : f32 to vector<1x128xf32>
    %303 = arith.mulf %302, %198 : vector<1x128xf32>
    %cst_92 = arith.constant 2.000000e+00 : f32
    %304 = vector.broadcast %cst_92 : f32 to vector<1x128xf32>
    %305 = arith.subf %304, %303 : vector<1x128xf32>
    %306 = arith.subf %305, %301 : vector<1x128xf32>
    %cst_93 = arith.constant 2.000000e+00 : f32
    %307 = vector.broadcast %cst_93 : f32 to vector<1x128xf32>
    %308 = arith.mulf %307, %198 : vector<1x128xf32>
    %cst_94 = arith.constant 2.000000e+00 : f32
    %309 = vector.broadcast %cst_94 : f32 to vector<1x128xf32>
    %310 = arith.subf %309, %308 : vector<1x128xf32>
    %311 = arith.addf %310, %301 : vector<1x128xf32>
    %312 = tpu.reciprocal %306 {approx = true} : vector<1x128xf32> -> vector<1x128xf32>
    %313 = arith.mulf %306, %312 : vector<1x128xf32>
    %cst_95 = arith.constant 2.000000e+00 : f32
    %314 = vector.broadcast %cst_95 : f32 to vector<1x128xf32>
    %315 = arith.subf %314, %313 : vector<1x128xf32>
    %316 = arith.mulf %312, %315 : vector<1x128xf32>
    %cst_96 = arith.constant 0.000000e+00 : f32
    %317 = vector.broadcast %cst_96 : f32 to vector<1x128xf32>
    %318 = arith.cmpf oeq, %306, %317 : vector<1x128xf32>
    %cst_97 = arith.constant 0x7F800000 : f32
    %319 = vector.broadcast %cst_97 : f32 to vector<1x128xf32>
    %320 = arith.select %318, %319, %316 : vector<1x128xi1>, vector<1x128xf32>
    %321 = tpu.reciprocal %311 {approx = true} : vector<1x128xf32> -> vector<1x128xf32>
    %322 = arith.mulf %311, %321 : vector<1x128xf32>
    %cst_98 = arith.constant 2.000000e+00 : f32
    %323 = vector.broadcast %cst_98 : f32 to vector<1x128xf32>
    %324 = arith.subf %323, %322 : vector<1x128xf32>
    %325 = arith.mulf %321, %324 : vector<1x128xf32>
    %cst_99 = arith.constant 0.000000e+00 : f32
    %326 = vector.broadcast %cst_99 : f32 to vector<1x128xf32>
    %327 = arith.cmpf oeq, %311, %326 : vector<1x128xf32>
    %cst_100 = arith.constant 0x7F800000 : f32
    %328 = vector.broadcast %cst_100 : f32 to vector<1x128xf32>
    %329 = arith.select %327, %328, %325 : vector<1x128xi1>, vector<1x128xf32>
    %330 = arith.addf %320, %329 : vector<1x128xf32>
    %cst_101 = arith.constant 9.99999997E-7 : f32
    %331 = vector.broadcast %cst_101 : f32 to vector<1x128xf32>
    %332 = arith.maximumf %331, %330 : vector<1x128xf32>
    %c0_102 = arith.constant 0 : index
    %c0_103 = arith.constant 0 : index
    %c0_104 = arith.constant 0 : index
    %333 = vector.load %arg3[%c0_102, %c0_103, %c0_104] : memref<2x1x128xf32, #tpu.memory_space<vmem>>, vector<1x1x128xf32>
    %334 = vector.shape_cast %333 : vector<1x1x128xf32> to vector<1x128xf32>
    %335 = vector.shape_cast %332 : vector<1x128xf32> to vector<1x1x128xf32>
    tpu.vector_store %arg3[%c0_102, %c0_103, %c0_104], %335 {strides = array<i32>} : memref<2x1x128xf32, #tpu.memory_space<vmem>>, vector<1x1x128xf32>,
    %336 = arith.subf %320, %329 : vector<1x128xf32>
    %cst_105 = arith.constant 5.000000e-01 : f32
    %337 = vector.broadcast %cst_105 : f32 to vector<1x128xf32>
    %338 = arith.mulf %337, %336 : vector<1x128xf32>
    %c1_106 = arith.constant 1 : index
    %c0_107 = arith.constant 0 : index
    %c0_108 = arith.constant 0 : index
    %339 = vector.load %arg3[%c1_106, %c0_107, %c0_108] : memref<2x1x128xf32, #tpu.memory_space<vmem>>, vector<1x1x128xf32>
    %340 = vector.shape_cast %339 : vector<1x1x128xf32> to vector<1x128xf32>
    %341 = vector.shape_cast %338 : vector<1x128xf32> to vector<1x1x128xf32>
    tpu.vector_store %arg3[%c1_106, %c0_107, %c0_108], %341 {strides = array<i32>} : memref<2x1x128xf32, #tpu.memory_space<vmem>>, vector<1x1x128xf32>,
    return
  }
  func.func @transform_0(%arg0: i32) -> i32 {
    %c0_i32 = arith.constant 0 : i32
    %c0_i32_0 = arith.constant 0 : i32
    return %c0_i32 : i32
  }
  func.func @transform_1(%arg0: i32) -> (i32, i32, i32) {
    %c0_i32 = arith.constant 0 : i32
    %c0_i32_0 = arith.constant 0 : i32
    %c0_i32_1 = arith.constant 0 : i32
    return %c0_i32, %arg0, %c0_i32_0 : i32, i32, i32
  }
  func.func @transform_2(%arg0: i32) -> (i32, i32, i32) {
    %c0_i32 = arith.constant 0 : i32
    %c0_i32_0 = arith.constant 0 : i32
    %c0_i32_1 = arith.constant 0 : i32
    return %c0_i32, %arg0, %c0_i32_0 : i32, i32, i32
  }
}

</mosaic_0001>

<llo_original>
// kernel: _kent_batched.1
$region0: #{_kent_batched.1}
  #allocation0 [shape = 'u32[]', space=smem, size = 0x4, offset = 0x4, fixed_abs, tag = 'smem constant byte address 0x4 - core index']
  #allocation1 [shape = 'u32[72,128]{1,0:T(1,128)}', space=vmem, size = 0x9000, scoped, tag = 'internal scratch']
  %s0 = inlined_call_operand.vmem [shape: f32[12], index: 0, kind: input, shape index: {}]
  %s1 = inlined_call_operand.vmem [shape: f32[12,1,128], index: 1, kind: input, shape index: {}]
  %s2 = inlined_call_operand.vmem [shape: f32[2,1,128], index: 2, kind: output, shape index: {}]
  %s3 = sld [smem:[#allocation0]]
  $region22: #{_kent_batched.1} parent=0
    _
  %s5 = ssub.s32 1, %s3
  %s6 = scalar_select 0, %s5, %s3
  $region1: #{_kent_batched.1} parent=0
    #allocation2 [shape = 'u8[512]{0}', space=smem, size = 0x200, scoped, tag = 'input window, operand 0, single buffered']
    #allocation3 [shape = 's32[1]{0}', space=sflag, size = 0x4, scoped, tag = 'scoped memory for _kent_batched.1']
    %7 = vsyncpa [#allocation3], 0
    // Predicated region
    $region2: #{_kent_batched.1} parent=1 // pred_check
      _
    $region3: #{_kent_batched.1} parent=1 // pred_check_branch
      %9 = sbr.rel (0) target = $region5
    $region4: #{_kent_batched.1} parent=1 // pred_region
      %11 = vsyncadd [#allocation3], 0
      %s13 = sshll.u32 %s0, 4
      %s14 = int_to_ptr.vmem [resolvable:$true] %s13
      %16 = dma.vmem_to_smem %s14, 16, [#allocation2], [#allocation3]
    $region5: #{_kent_batched.1} parent=1 // pred_fallthru
      _
    // Predicated region
    $region6: #{_kent_batched.1} parent=1 // pred_check
      _
    $region7: #{_kent_batched.1} parent=1 // pred_check_branch
      %18 = sbr.rel (0) target = $region9
    $region8: #{_kent_batched.1} parent=1 // pred_region
      _
    $region9: #{_kent_batched.1} parent=1 // pred_fallthru
      _
    // Predicated region
    $region10: #{_kent_batched.1} parent=1 // pred_check
      _
    $region11: #{_kent_batched.1} parent=1 // pred_check_branch
      %20 = sbr.rel (0) target = $region13
    $region12: #{_kent_batched.1} parent=1 // pred_region
      %22 = dma.done [#allocation3], 16
    $region13: #{_kent_batched.1} parent=1 // pred_fallthru
      _
    %23 = sfence
    %v24 = vld [vmem:[%s1] sm:$0x1]
    %s25 = scalar_lea.vmem %s1, 1
    %v26 = vld [vmem:[%s25] sm:$0x1]
    %s27 = scalar_lea.vmem %s1, 2
    %v28 = vld [vmem:[%s27] sm:$0x1]
    %s29 = scalar_lea.vmem %s1, 3
    %v30 = vld [vmem:[%s29] sm:$0x1]
    %s31 = scalar_lea.vmem %s1, 4
    %v32 = vld [vmem:[%s31] sm:$0x1]
    %s33 = scalar_lea.vmem %s1, 5
    %v34 = vld [vmem:[%s33] sm:$0x1]
    %s35 = scalar_lea.vmem %s1, 6
    %v36 = vld [vmem:[%s35] sm:$0x1]
    %s37 = scalar_lea.vmem %s1, 7
    %v38 = vld [vmem:[%s37] sm:$0x1]
    %s39 = scalar_lea.vmem %s1, 8
    %v40 = vld [vmem:[%s39] sm:$0x1]
    %s41 = scalar_lea.vmem %s1, 9
    %v42 = vld [vmem:[%s41] sm:$0x1]
    %s43 = scalar_lea.vmem %s1, 10
    %v44 = vld [vmem:[%s43] sm:$0x1]
    %s45 = scalar_lea.vmem %s1, 11
    %v46 = vld [vmem:[%s45] sm:$0x1]
    %s47 = sld [smem:[#allocation2]]
    %v48 = vstv %s47
    %v49 = vmul.f32 %v24, %v48
    %s50 = sld [smem:[#allocation2 + $0x3]]
    %v51 = vstv %s50
    %v52 = vmul.f32 %v26, %v51
    %v53 = vadd.f32 %v49, %v52
    %s54 = sld [smem:[#allocation2 + $0x6]]
    %v55 = vstv %s54
    %v56 = vmul.f32 %v28, %v55
    %v57 = vadd.f32 %v53, %v56
    %s58 = sld [smem:[#allocation2 + $0x9]]
    %v59 = vstv %s58
    %v60 = vadd.f32 %v57, %v59
    %s61 = sld [smem:[#allocation2 + $0x1]]
    %v62 = vstv %s61
    %v63 = vmul.f32 %v24, %v62
    %s64 = sld [smem:[#allocation2 + $0x4]]
    %v65 = vstv %s64
    %v66 = vmul.f32 %v26, %v65
    %v67 = vadd.f32 %v63, %v66
    %s68 = sld [smem:[#allocation2 + $0x7]]
    %v69 = vstv %s68
    %v70 = vmul.f32 %v28, %v69
    %v71 = vadd.f32 %v67, %v70
    %s72 = sld [smem:[#allocation2 + $0xa]]
    %v73 = vstv %s72
    %v74 = vadd.f32 %v71, %v73
    %s75 = sld [smem:[#allocation2 + $0x2]]
    %v76 = vstv %s75
    %v77 = vmul.f32 %v24, %v76
    %s78 = sld [smem:[#allocation2 + $0x5]]
    %v79 = vstv %s78
    %v80 = vmul.f32 %v26, %v79
    %v81 = vadd.f32 %v77, %v80
    %s82 = sld [smem:[#allocation2 + $0x8]]
    %v83 = vstv %s82
    %v84 = vmul.f32 %v28, %v83
    %v85 = vadd.f32 %v81, %v84
    %s86 = sld [smem:[#allocation2 + $0xb]]
    %v87 = vstv %s86
    %v88 = vadd.f32 %v85, %v87
    %v89 = vmul.f32 %v30, %v48
    %v90 = vmul.f32 %v32, %v51
    %v91 = vadd.f32 %v89, %v90
    %v92 = vmul.f32 %v34, %v55
    %v93 = vadd.f32 %v91, %v92
    %v94 = vadd.f32 %v93, %v59
    %v95 = vmul.f32 %v30, %v62
    %v96 = vmul.f32 %v32, %v65
    %v97 = vadd.f32 %v95, %v96
    %v98 = vmul.f32 %v34, %v69
    %v99 = vadd.f32 %v97, %v98
    %v100 = vadd.f32 %v99, %v73
    %v101 = vmul.f32 %v30, %v76
    %v102 = vmul.f32 %v32, %v79
    %v103 = vadd.f32 %v101, %v102
    %v104 = vmul.f32 %v34, %v83
    %v105 = vadd.f32 %v103, %v104
    %v106 = vadd.f32 %v105, %v87
    %v107 = vmul.f32 %v36, %v48
    %v108 = vmul.f32 %v38, %v51
    %v109 = vadd.f32 %v107, %v108
    %v110 = vmul.f32 %v40, %v55
    %v111 = vadd.f32 %v109, %v110
    %v112 = vadd.f32 %v111, %v59
    %v113 = vmul.f32 %v36, %v62
    %v114 = vmul.f32 %v38, %v65
    %v115 = vadd.f32 %v113, %v114
    %v116 = vmul.f32 %v40, %v69
    %v117 = vadd.f32 %v115, %v116
    %v118 = vadd.f32 %v117, %v73
    %v119 = vmul.f32 %v36, %v76
    %v120 = vmul.f32 %v38, %v79
    %v121 = vadd.f32 %v119, %v120
    %v122 = vmul.f32 %v40, %v83
    %v123 = vadd.f32 %v121, %v122
    %v124 = vadd.f32 %v123, %v87
    %v125 = vmul.f32 %v42, %v48
    %v126 = vmul.f32 %v44, %v51
    %v127 = vadd.f32 %v125, %v126
    %v128 = vmul.f32 %v46, %v55
    %v129 = vadd.f32 %v127, %v128
    %v130 = vadd.f32 %v129, %v59
    %v131 = vmul.f32 %v42, %v62
    %v132 = vmul.f32 %v44, %v65
    %v133 = vadd.f32 %v131, %v132
    %v134 = vmul.f32 %v46, %v69
    %v135 = vadd.f32 %v133, %v134
    %v136 = vadd.f32 %v135, %v73
    %v137 = vmul.f32 %v42, %v76
    %v138 = vmul.f32 %v44, %v79
    %v139 = vadd.f32 %v137, %v138
    %v140 = vmul.f32 %v46, %v83
    %v141 = vadd.f32 %v139, %v140
    %v142 = vadd.f32 %v141, %v87
    %v143 = vmul.f32 %v130, %v130
    %v144 = vmul.f32 %v136, %v136
    %v145 = vadd.f32 %v143, %v144
    %v146 = vmul.f32 %v142, %v142
    %v147 = vadd.f32 %v145, %v146
    %v148 = vrsqrt.pop %v147
    %v149 = vmul.f32 %v148, %v147
    %v150 = vmul.f32 %v149, %v148
    %v151 = vmul.f32 0.5, %v150
    %v152 = vsub.f32 1.5, %v151
    %v153 = vmul.f32 %v148, %v152
    %vm154 = vweird.f32 %v147
    %vm155 = vweird.f32 %v148
    %vm156 = vmor %vm154, %vm155
    %v157 = vsel %vm156, %v148, %v153
    %v158 = vmul.f32 %v147, %v157
    %v159 = vmul.f32 %v130, %v157
    %v160 = vmul.f32 %v136, %v157
    %v161 = vmul.f32 %v142, %v157
    %v162 = vmax.f32 %v159, -0.999999
    %v163 = vmin.f32 %v162, 0.999999
    %v164 = vmul.f32 %v163, %v163
    %v165 = vsub.f32 1.0, %v164
    %v166 = vmax.f32 %v165, 0.0
    %v167 = vrsqrt.pop %v166
    %v168 = vmul.f32 %v167, %v166
    %v169 = vmul.f32 %v168, %v167
    %v170 = vmul.f32 0.5, %v169
    %v171 = vsub.f32 1.5, %v170
    %v172 = vmul.f32 %v167, %v171
    %v173 = vmul.f32 %v166, %v172
    %vm174 = vcmp.eq.f32.partialorder %v166, inf
    %v175 = vsel %vm174, %v166, %v173
    %vm176 = vcmp.eq.f32.partialorder %v166, 0.0
    %v177 = vand.u32 %v166, 2147483648
    %v178 = vsel %vm176, %v177, %v175
    %vm179 = vcmp.eq.f32.partialorder %v160, 0.0
    %v180 = vsel %vm179, 1e-06, 0.0
    %v181 = vadd.f32 %v160, %v180
    %v182 = vmul.f32 %v181, %v181
    %v183 = vmul.f32 %v161, %v161
    %v184 = vadd.f32 %v182, %v183
    %v185 = vrsqrt.pop %v184
    %v186 = vmul.f32 %v185, %v184
    %v187 = vmul.f32 %v186, %v185
    %v188 = vmul.f32 0.5, %v187
    %v189 = vsub.f32 1.5, %v188
    %v190 = vmul.f32 %v185, %v189
    %vm191 = vweird.f32 %v184
    %vm192 = vweird.f32 %v185
    %vm193 = vmor %vm191, %vm192
    %v194 = vsel %vm193, %v185, %v190
    %v195 = vmul.f32 %v181, %v194
    %v196 = vmul.f32 %v161, %v194
    %v197 = vmul.f32 %v163, %v195
    %v198 = vmul.f32 %v163, %v196
    %v199 = vsub.f32 0.0, %v178
    %v200 = vmul.f32 %v60, %v199
    %v201 = vmul.f32 %v74, %v197
    %v202 = vadd.f32 %v200, %v201
    %v203 = vmul.f32 %v88, %v198
    %v204 = vadd.f32 %v202, %v203
    %v205 = vmul.f32 %v94, %v199
    %v206 = vmul.f32 %v100, %v197
    %v207 = vadd.f32 %v205, %v206
    %v208 = vmul.f32 %v106, %v198
    %v209 = vadd.f32 %v207, %v208
    %v210 = vmul.f32 %v112, %v199
    %v211 = vmul.f32 %v118, %v197
    %v212 = vadd.f32 %v210, %v211
    %v213 = vmul.f32 %v124, %v198
    %v214 = vadd.f32 %v212, %v213
    %v215 = vsub.f32 0.0, %v196
    %v216 = vmul.f32 %v74, %v215
    %v217 = vmul.f32 %v88, %v195
    %v218 = vadd.f32 %v216, %v217
    %v219 = vmul.f32 %v100, %v215
    %v220 = vmul.f32 %v106, %v195
    %v221 = vadd.f32 %v219, %v220
    %v222 = vmul.f32 %v118, %v215
    %v223 = vmul.f32 %v124, %v195
    %v224 = vadd.f32 %v222, %v223
    %v225 = vmul.f32 %v199, %v204
    %v226 = vmul.f32 %v197, %v209
    %v227 = vadd.f32 %v225, %v226
    %v228 = vmul.f32 %v198, %v214
    %v229 = vadd.f32 %v227, %v228
    %v230 = vmul.f32 %v199, %v218
    %v231 = vmul.f32 %v197, %v221
    %v232 = vadd.f32 %v230, %v231
    %v233 = vmul.f32 %v198, %v224
    %v234 = vadd.f32 %v232, %v233
    %v235 = vmul.f32 %v215, %v209
    %v236 = vmul.f32 %v195, %v214
    %v237 = vadd.f32 %v235, %v236
    %v238 = vmul.f32 %v215, %v221
    %v239 = vmul.f32 %v195, %v224
    %v240 = vadd.f32 %v238, %v239
    %v241 = vmul.f32 %v234, 2.0
    %v242 = vsub.f32 %v229, %v240
    %v243 = vmul.f32 %v241, %v241
    %v244 = vmul.f32 %v242, %v242
    %v245 = vadd.f32 %v243, %v244
    %vm246 = vcmp.eq.f32.partialorder %v245, 0.0
    %v247 = vrsqrt.pop %v245
    %v248 = vmul.f32 %v247, %v245
    %v249 = vmul.f32 %v248, %v247
    %v250 = vmul.f32 0.5, %v249
    %v251 = vsub.f32 1.5, %v250
    %v252 = vmul.f32 %v247, %v251
    %vm253 = vweird.f32 %v245
    %vm254 = vweird.f32 %v247
    %vm255 = vmor %vm253, %vm254
    %v256 = vsel %vm255, %v247, %v252
    %v257 = vsel %vm246, 0.0, %v256
    %v258 = vadd.f32 %v234, %v237
    %v259 = vmul.f32 %v241, %v258
    %v260 = vadd.f32 %v244, %v259
    %v261 = vmul.f32 %v260, %v257
    %v262 = vmul.f32 %v158, 2.0
    %v263 = vsub.f32 2.0, %v262
    %v264 = vsub.f32 %v263, %v261
    %v265 = vadd.f32 %v263, %v261
    %v266 = vrcp.pop %v264
    %v267 = vmul.f32 %v264, %v266
    %v268 = vsub.f32 2.0, %v267
    %v269 = vmul.f32 %v266, %v268
    %vm270 = vcmp.eq.f32.partialorder %v264, 0.0
    %v271 = vsel %vm270, inf, %v269
    %v272 = vrcp.pop %v265
    %v273 = vmul.f32 %v265, %v272
    %v274 = vsub.f32 2.0, %v273
    %v275 = vmul.f32 %v272, %v274
    %vm276 = vcmp.eq.f32.partialorder %v265, 0.0
    %v277 = vsel %vm276, inf, %v275
    %v278 = vadd.f32 %v271, %v277
    %v279 = vmax.f32 %v278, 1e-06
    %280 = vst [vmem:[%s2] sm:$0x1] %v279
    %v281 = vsub.f32 %v271, %v277
    %v282 = vmul.f32 %v281, 0.5
    %s283 = scalar_lea.vmem %s2, 1
    %284 = vst [vmem:[%s283] sm:$0x1] %v282
    // Predicated region
    $region14: #{_kent_batched.1} parent=1 // pred_check
      _
    $region15: #{_kent_batched.1} parent=1 // pred_check_branch
      %286 = sbr.rel (0) target = $region17
    $region16: #{_kent_batched.1} parent=1 // pred_region
      _
    $region17: #{_kent_batched.1} parent=1 // pred_fallthru
      _
    // Predicated region
    $region18: #{_kent_batched.1} parent=1 // pred_check
      _
    $region19: #{_kent_batched.1} parent=1 // pred_check_branch
      %288 = sbr.rel (0) target = $region21
    $region20: #{_kent_batched.1} parent=1 // pred_region
      _
    $region21: #{_kent_batched.1} parent=1 // pred_fallthru
      _
    %289 = vsyncpa [#allocation3], 1

</llo_original>
